<compile_context>
chip_gen: v7x
topology: tpu7x:2x2x1
jax: 0.10.0
libtpu: 0.0.40
codegen_flags: <defaults>
</compile_context>

<pallas_src>
import functools
import math

import jax
import jax.numpy as jnp
from jax.experimental import pallas as pl
from jax.experimental.pallas import tpu as pltpu

_VMEM_LIMIT = 48 * 1024 * 1024   # scoped-VMEM headroom; stays under v7x 64 MiB physical


def _round_up(n, m):
    return ((n + m - 1) // m) * m


def _pad_dim(d):
    """Channel padding: narrow dims only to the bf16 sublane quantum (16) so we
    don't DMA mostly-zero bytes (sa1 cin=6); wide dims stay lane-dense (128)."""
    p = _round_up(d, 16)
    return p if p <= 128 else _round_up(d, 128)


def _pick_tile(n, max_tile, gran):
    """Largest row tile <= max_tile, multiple of `gran`, and (when possible)
    giving >= 2 grid steps so both v7x TensorCores get work."""
    tile = min(max_tile, _round_up(max(n, gran), gran))
    if n > gran:
        tile = min(tile, _round_up((n + 1) // 2, gran))
    return max(tile, gran)


# ----------------------------------------------------------------------------
# Fused multi-layer MLP kernel:  o = actL(...act1(x @ W1 + b1)... @ WL + bL)
# ----------------------------------------------------------------------------
def _mlp_kernel(*refs, activations):
    nl = len(activations)
    x_ref = refs[0]
    w_refs = refs[1:1 + 2 * nl:2]
    b_refs = refs[2:2 + 2 * nl:2]
    o_ref = refs[1 + 2 * nl]

    h = x_ref[...]                       # bf16 row tile
    acc = None
    for li in range(nl):
        acc = jnp.dot(h, w_refs[li][...], preferred_element_type=jnp.float32)
        acc = acc + b_refs[li][...]
        act = activations[li]
        if act == "relu":
            acc = jnp.maximum(acc, 0.0)
        elif act == "sigmoid":
            acc = jax.nn.sigmoid(acc)
        if li + 1 < nl:
            h = acc.astype(jnp.bfloat16)  # stay in VMEM between layers
    o_ref[...] = acc.astype(o_ref.dtype)


def pallas_mlp(x, mlp, row_tile=512, out_dtype=jnp.bfloat16):
    """x: [N, in_dim] -> [N, out_dim] through the fused Linear(+act) stack."""
    n = x.shape[0]
    in_dim, in_pad = mlp["in_dim"], mlp["in_pad"]
    out_dim, out_pad = mlp["out_dim"], mlp["out_pad"]
    layers, acts = mlp["layers"], mlp["acts"]

    tile = _pick_tile(n, row_tile, 16)           # bf16 sublane packing
    npad = _round_up(max(n, tile), tile)

    xp = jnp.zeros((npad, in_pad), jnp.bfloat16)
    xp = xp.at[:n, :in_dim].set(x.astype(jnp.bfloat16))

    in_specs = [pl.BlockSpec((tile, in_pad), lambda i: (i, 0))]
    args = [xp]
    for (wp, bp) in layers:
        in_specs.append(pl.BlockSpec(wp.shape, lambda i: (0, 0)))
        in_specs.append(pl.BlockSpec(bp.shape, lambda i: (0, 0)))
        args.extend([wp, bp])

    out = pl.pallas_call(
        functools.partial(_mlp_kernel, activations=acts),
        grid=(npad // tile,),
        in_specs=in_specs,
        out_specs=pl.BlockSpec((tile, out_pad), lambda i: (i, 0)),
        out_shape=jax.ShapeDtypeStruct((npad, out_pad), out_dtype),
        compiler_params=pltpu.CompilerParams(
            dimension_semantics=("parallel",),
            vmem_limit_bytes=_VMEM_LIMIT),
    )(*args)
    return out[:n, :out_dim]


# ----------------------------------------------------------------------------
# Fused MLP + GLOBAL max-pool (GlobalSAModule): the [N, C_out] activation
# never reaches HBM; the output block is the running max across grid steps.
# ----------------------------------------------------------------------------
def _mlp_global_max_kernel(*refs, activations, n_valid, tile):
    nl = len(activations)
    x_ref = refs[0]
    w_refs = refs[1:1 + 2 * nl:2]
    b_refs = refs[2:2 + 2 * nl:2]
    o_ref = refs[1 + 2 * nl]

    i = pl.program_id(0)

    @pl.when(i == 0)
    def _():
        o_ref[...] = jnp.zeros_like(o_ref)

    h = x_ref[...]
    acc = None
    for li in range(nl):
        acc = jnp.dot(h, w_refs[li][...], preferred_element_type=jnp.float32)
        acc = acc + b_refs[li][...]
        acc = jnp.maximum(acc, 0.0)                   # shared MLP: ReLU every layer
        if li + 1 < nl:
            h = acc.astype(jnp.bfloat16)
    # Padded rows are relu(bias chain), not zero: mask them before the max.
    # Final layer is ReLU, so activations >= 0 and masking/init with 0 is exact.
    row = i * tile + jax.lax.broadcasted_iota(jnp.int32, acc.shape, 0)
    acc = jnp.where(row < n_valid, acc, 0.0)
    tile_max = jnp.max(acc, axis=0, keepdims=True)    # [1, out_pad]
    o_ref[...] = jnp.maximum(o_ref[...], tile_max)


def pallas_mlp_global_max(x, mlp, row_tile=512):
    n = x.shape[0]
    in_dim, in_pad = mlp["in_dim"], mlp["in_pad"]
    out_dim, out_pad = mlp["out_dim"], mlp["out_pad"]
    layers, acts = mlp["layers"], mlp["acts"]

    tile = _pick_tile(n, row_tile, 16)
    npad = _round_up(max(n, tile), tile)

    xp = jnp.zeros((npad, in_pad), jnp.bfloat16)
    xp = xp.at[:n, :in_dim].set(x.astype(jnp.bfloat16))

    in_specs = [pl.BlockSpec((tile, in_pad), lambda i: (i, 0))]
    args = [xp]
    for (wp, bp) in layers:
        in_specs.append(pl.BlockSpec(wp.shape, lambda i: (0, 0)))
        in_specs.append(pl.BlockSpec(bp.shape, lambda i: (0, 0)))
        args.extend([wp, bp])

    out = pl.pallas_call(
        functools.partial(_mlp_global_max_kernel, activations=acts,
                          n_valid=n, tile=tile),
        grid=(npad // tile,),
        in_specs=in_specs,
        out_specs=pl.BlockSpec((1, out_pad), lambda i: (0, 0)),   # revisited block
        out_shape=jax.ShapeDtypeStruct((1, out_pad), jnp.float32),
        compiler_params=pltpu.CompilerParams(
            dimension_semantics=("arbitrary",),
            vmem_limit_bytes=_VMEM_LIMIT),
    )(*args)
    return out[:, :out_dim]


# ----------------------------------------------------------------------------
# Fused SA kernel: shared MLP over k neighbors of each center + max-pool over
# the neighbor axis inside one pallas_call (no [m,k,C_out] in HBM).
# ----------------------------------------------------------------------------
def _sa_mlp_max_kernel(*refs, activations):
    nl = len(activations)
    feat_ref, mask_ref = refs[0], refs[1]
    w_refs = refs[2:2 + 2 * nl:2]
    b_refs = refs[3:3 + 2 * nl:2]
    o_ref = refs[2 + 2 * nl]

    tm, kk, cin = feat_ref.shape
    h = feat_ref[...].reshape(tm * kk, cin)          # bf16, contiguous merge
    acc = None
    for li in range(nl):
        acc = jnp.dot(h, w_refs[li][...], preferred_element_type=jnp.float32)
        acc = acc + b_refs[li][...]
        acc = jnp.maximum(acc, 0.0)                  # SA shared-MLP: ReLU every layer
        if li + 1 < nl:
            h = acc.astype(jnp.bfloat16)
    cout = acc.shape[1]
    h3 = acc.reshape(tm, kk, cout)
    h3 = jnp.where(mask_ref[...][:, :, None] > 0.0, h3, jnp.float32(-3e38))
    pooled = jnp.max(h3, axis=1)                     # neighbor max-reduction
    # All layers are ReLU -> clamp guards the "no valid neighbor" corner case.
    o_ref[...] = jnp.maximum(pooled, 0.0).astype(o_ref.dtype)


def pallas_sa_mlp_max(feat, valid, mlp):
    """feat: [m, k, C_in], valid: [m, k] bool -> [m, C_out] bf16."""
    m, k, cin = feat.shape
    in_dim, in_pad = mlp["in_dim"], mlp["in_pad"]
    out_dim, out_pad = mlp["out_dim"], mlp["out_pad"]
    layers, acts = mlp["layers"], mlp["acts"]
    assert cin == in_dim

    # Wide-channel stacks get a smaller center tile so fused [tile*k, C]
    # intermediates stay well inside scoped VMEM (v7x: 64 MiB physical).
    base_tile = 128 if in_pad <= 64 else 64
    tile_m = _pick_tile(m, base_tile, 16)
    mpad = _round_up(max(m, tile_m), tile_m)
    kpad = _round_up(max(k, 16), 16)                 # bf16 sublane packing for reshape

    featp = jnp.zeros((mpad, kpad, in_pad), jnp.bfloat16)
    featp = featp.at[:m, :k, :cin].set(feat.astype(jnp.bfloat16))
    maskp = jnp.zeros((mpad, kpad), jnp.float32)
    maskp = maskp.at[:m, :k].set(valid.astype(jnp.float32))

    in_specs = [
        pl.BlockSpec((tile_m, kpad, in_pad), lambda i: (i, 0, 0)),
        pl.BlockSpec((tile_m, kpad), lambda i: (i, 0)),
    ]
    args = [featp, maskp]
    for (wp, bp) in layers:
        in_specs.append(pl.BlockSpec(wp.shape, lambda i: (0, 0)))
        in_specs.append(pl.BlockSpec(bp.shape, lambda i: (0, 0)))
        args.extend([wp, bp])

    out = pl.pallas_call(
        functools.partial(_sa_mlp_max_kernel, activations=acts),
        grid=(mpad // tile_m,),
        in_specs=in_specs,
        out_specs=pl.BlockSpec((tile_m, out_pad), lambda i: (i, 0)),
        out_shape=jax.ShapeDtypeStruct((mpad, out_pad), jnp.bfloat16),
        compiler_params=pltpu.CompilerParams(
            dimension_semantics=("parallel",),
            vmem_limit_bytes=_VMEM_LIMIT),
    )(*args)
    return out[:m, :out_dim]


# ----------------------------------------------------------------------------
# Pairwise -squared-distance kernel, 2D parallel grid, radius mask fused in.
# Emits -d^2 (masked to -1e30 beyond radius) so top_k can be applied directly.
# ----------------------------------------------------------------------------
def _neg_sqdist_kernel(a_ref, bt_ref, o_ref, *, r2):
    a = a_ref[...]                                        # [tile_m, dpad]
    bt = bt_ref[...]                                      # [dpad, tile_n]
    a2 = jnp.sum(a * a, axis=1, keepdims=True)            # per row tile only
    b2 = jnp.sum(bt * bt, axis=0, keepdims=True)          # per col tile only
    ab = jnp.dot(a, bt, preferred_element_type=jnp.float32)
    d2 = jnp.maximum(a2 + b2 - 2.0 * ab, 0.0)
    out = -d2
    if r2 is not None:
        out = jnp.where(d2 <= r2, out, jnp.float32(-1e30))
    o_ref[...] = out


def pallas_neg_sqdist(a, b, r2=None, row_tile=256, col_tile=512):
    """a: [M, D], b: [N, D] -> [M, N] of -||a_i - b_j||^2 (f32).
    With r2 set, entries outside the radius are -1e30 (ready for top_k)."""
    a = a.astype(jnp.float32)
    b = b.astype(jnp.float32)
    m, d = a.shape
    n = b.shape[0]
    dpad = 8
    tile_m = _pick_tile(m, row_tile, 8)
    tile_n = _pick_tile(n, col_tile, 128)
    mpad = _round_up(max(m, tile_m), tile_m)
    npad = _round_up(max(n, tile_n), tile_n)

    ap = jnp.zeros((mpad, dpad), jnp.float32).at[:m, :d].set(a)
    btp = jnp.zeros((dpad, npad), jnp.float32).at[:d, :n].set(b.T)

    out = pl.pallas_call(
        functools.partial(_neg_sqdist_kernel, r2=r2),
        grid=(mpad // tile_m, npad // tile_n),
        in_specs=[
            pl.BlockSpec((tile_m, dpad), lambda i, j: (i, 0)),
            pl.BlockSpec((dpad, tile_n), lambda i, j: (0, j)),
        ],
        out_specs=pl.BlockSpec((tile_m, tile_n), lambda i, j: (i, j)),
        out_shape=jax.ShapeDtypeStruct((mpad, npad), jnp.float32),
        compiler_params=pltpu.CompilerParams(
            dimension_semantics=("parallel", "parallel")),
    )(ap, btp)
    return out[:m, :n]


# ----------------------------------------------------------------------------
# Farthest-point sampling: the whole greedy loop runs inside one Pallas kernel
# (lane-major pos in VMEM, running min-distances in VMEM scratch).
# ----------------------------------------------------------------------------
def _fps_kernel(post_ref, o_ref, dists_ref, *, n, m):
    dpad, npad = post_ref.shape
    row = jax.lax.broadcasted_iota(jnp.int32, (1, npad), 1)
    # +inf-ish for real points, -inf-ish for padded columns (never selected)
    dists_ref[...] = jnp.where(row < n, jnp.float32(3e38), jnp.float32(-3e38))
    o_ref[pl.ds(0, 1), :] = jnp.zeros((1, 128), jnp.int32)

    post = post_ref[...]                                   # [8, npad] f32
    pos2 = jnp.sum(post * post, axis=0, keepdims=True)     # [1, npad]

    # initial center = point 0, as a column vector [8, 1]
    sel0 = (row == 0).astype(jnp.float32)
    c0 = jnp.sum(post * sel0, axis=1, keepdims=True)

    def body(i, c):
        c2 = jnp.sum(c * c)
        cross = jnp.sum(post * c, axis=0, keepdims=True)   # [1, npad]
        d2 = jnp.maximum(pos2 + c2 - 2.0 * cross, 0.0)
        nd = jnp.minimum(dists_ref[...], d2)
        dists_ref[...] = nd
        mx = jnp.max(nd)
        idx = jnp.min(jnp.where(nd == mx, row, npad))      # first argmax
        o_ref[pl.ds(i, 1), :] = jnp.full((1, 128), idx, jnp.int32)
        sel = (row == idx).astype(jnp.float32)
        return jnp.sum(post * sel, axis=1, keepdims=True)  # next center [8, 1]

    jax.lax.fori_loop(1, m, body, c0)


def farthest_point_sample(pos, m):
    n = pos.shape[0]
    d = pos.shape[1]
    npad = _round_up(max(n, 128), 128)
    postp = jnp.zeros((8, npad), jnp.float32).at[:d, :n].set(pos.T.astype(jnp.float32))
    mpad = _round_up(max(m, 8), 8)
    out = pl.pallas_call(
        functools.partial(_fps_kernel, n=n, m=m),
        out_shape=jax.ShapeDtypeStruct((mpad, 128), jnp.int32),
        scratch_shapes=[pltpu.VMEM((1, npad), jnp.float32)],
    )(postp)
    return out[:m, 0]


# ----------------------------------------------------------------------------
# Parameter init (PyTorch-Linear-style uniform) + one-time padding/bf16 prep
# ----------------------------------------------------------------------------
def init_linear(key, fan_in, fan_out):
    kw, kb = jax.random.split(key)
    bound = 1.0 / math.sqrt(fan_in)
    w = jax.random.uniform(kw, (fan_in, fan_out), jnp.float32, -bound, bound)
    b = jax.random.uniform(kb, (fan_out,), jnp.float32, -bound, bound)
    return (w, b)


def _prep_mlp(layer_params, acts):
    """Pad weights/biases once; weights bf16, biases f32.  First-layer K uses
    the narrow-pad rule (16-multiple) so tiny channel counts don't DMA zeros."""
    layers = []
    kpads = []
    for li, (w, b) in enumerate(layer_params):
        kdim, cdim = w.shape
        kpad = _pad_dim(kdim) if li == 0 else _round_up(kdim, 128)
        cpad = _round_up(cdim, 128)
        wp = jnp.zeros((kpad, cpad), jnp.bfloat16)
        wp = wp.at[:kdim, :cdim].set(w.astype(jnp.bfloat16))
        bp = jnp.zeros((1, cpad), jnp.float32).at[0, :cdim].set(b)
        layers.append((wp, bp))
        kpads.append(kpad)
    in_dim = layer_params[0][0].shape[0]
    out_dim = layer_params[-1][0].shape[1]
    return {
        "layers": layers,
        "acts": tuple(acts),
        "in_dim": in_dim,
        "in_pad": kpads[0],
        "out_dim": out_dim,
        "out_pad": layers[-1][0].shape[1],
    }


def init_mlp(key, channels, acts=None):
    keys = jax.random.split(key, len(channels) - 1)
    params = [init_linear(kk, ci, co)
              for kk, ci, co in zip(keys, channels[:-1], channels[1:])]
    if acts is None:
        acts = ["relu"] * (len(channels) - 1)
    return _prep_mlp(params, acts)


def init_net(key, num_classes):
    ks = jax.random.split(key, 9)
    lin1 = init_linear(ks[6], 128, 128)
    lin2 = init_linear(ks[7], 128, 128)
    lin3 = init_linear(ks[8], 128, num_classes)
    return {
        "sa1": init_mlp(ks[0], [3 + 3, 64, 64, 128]),
        "sa2": init_mlp(ks[1], [128 + 3, 128, 128, 256]),
        "sa3": init_mlp(ks[2], [256 + 3, 256, 512, 1024]),
        "fp3": init_mlp(ks[3], [1024 + 256, 256, 256]),
        "fp2": init_mlp(ks[4], [256 + 128, 256, 128]),
        "fp1": init_mlp(ks[5], [128 + 3, 128, 128, 128]),
        # lin1+ReLU, dropout(id), lin2, dropout(id), lin3+sigmoid fused head
        "head": _prep_mlp([lin1, lin2, lin3], ["relu", None, "sigmoid"]),
    }


# ----------------------------------------------------------------------------
# PointNet++ building blocks (index glue in JAX, compute in Pallas)
# ----------------------------------------------------------------------------
def sa_module(x, pos, ratio, r, mlp, max_neighbors=64):
    """Set-abstraction: FPS -> radius grouping -> fused shared MLP + max pool."""
    n = pos.shape[0]
    m = int(math.ceil(ratio * n))
    idx = farthest_point_sample(pos, m)
    centers = pos[idx]                                   # [m, 3] f32

    # -d^2 with the radius mask fused in-kernel (beyond radius -> -1e30)
    negd2 = pallas_neg_sqdist(centers, pos, r2=float(r) * float(r))
    k = min(max_neighbors, n)
    neg_vals, nbr_idx = jax.lax.top_k(negd2, k)          # nearest k in radius
    valid = neg_vals > jnp.float32(-1e29)                # [m, k]

    # TODO(synk): fuse this gather/concat into the SA kernel (scalar-prefetch
    # nbr_idx + in-kernel DMA of neighbor rows) so [m,k,C+3] never hits HBM.
    x_j = x[nbr_idx].astype(jnp.bfloat16)                # [m, k, C]
    rel = (pos[nbr_idx] - centers[:, None, :]).astype(jnp.bfloat16)
    feat = jnp.concatenate([x_j, rel], axis=-1)          # [m, k, C+3] bf16

    out = pallas_sa_mlp_max(feat, valid, mlp)            # fused MLP + max, bf16
    return out, centers


def global_sa_module(x, pos, mlp):
    h_in = jnp.concatenate([x.astype(jnp.bfloat16), pos.astype(jnp.bfloat16)], axis=1)
    out = pallas_mlp_global_max(h_in, mlp)               # fused MLP + global max
    return out, jnp.zeros((1, 3), jnp.float32)


def knn_interpolate(x, pos, pos_skip, k):
    negd2 = pallas_neg_sqdist(pos_skip, pos)             # [N_skip, N_src] = -d^2
    k = min(k, pos.shape[0])
    neg_vals, idx = jax.lax.top_k(negd2, k)
    sq = -neg_vals
    w = 1.0 / jnp.clip(sq, 1e-16)                        # PyG weighting
    gathered = x[idx].astype(jnp.float32)                # [N_skip, k, C]
    return (jnp.sum(gathered * w[..., None], axis=1)
            / jnp.sum(w, axis=1, keepdims=True))


def fp_module(x, pos, x_skip, pos_skip, k, mlp):
    xi = knn_interpolate(x, pos, pos_skip, k)
    if x_skip is not None:
        xi = jnp.concatenate([xi.astype(jnp.bfloat16),
                              x_skip.astype(jnp.bfloat16)], axis=1)
    else:
        xi = xi.astype(jnp.bfloat16)
    return pallas_mlp(xi, mlp), pos_skip


# ----------------------------------------------------------------------------
# Net forward
# ----------------------------------------------------------------------------
def net_forward(params, x, pos):
    # sa0_out = (x, pos, batch); single graph => batch is all zeros (ignored).
    x0, pos0 = x, pos
    x1, pos1 = sa_module(x0, pos0, ratio=0.5, r=0.1, mlp=params["sa1"])
    x2, pos2 = sa_module(x1, pos1, ratio=0.5, r=0.5, mlp=params["sa2"])
    x3, pos3 = global_sa_module(x2, pos2, params["sa3"])

    f3, p3 = fp_module(x3, pos3, x2, pos2, k=1, mlp=params["fp3"])
    f2, p2 = fp_module(f3, p3, x1, pos1, k=3, mlp=params["fp2"])
    f1, _ = fp_module(f2, p2, x0, pos0, k=3, mlp=params["fp1"])

    # lin1+ReLU -> dropout(identity, eval) -> lin2 -> dropout -> lin3+sigmoid
    # fused into a single Pallas kernel; final head stays f32.
    return pallas_mlp(f1, params["head"], out_dtype=jnp.float32)


# ----------------------------------------------------------------------------
if __name__ == "__main__":
    num_classes = 4
    n_points = 64

    key = jax.random.PRNGKey(0)
    k_param, k_x, k_pos = jax.random.split(key, 3)

    params = init_net(k_param, num_classes)
    # data.x: per-point features (e.g. normals) [N, 3]; data.pos: [N, 3]
    x = jax.random.normal(k_x, (n_points, 3), jnp.float32)
    pos = jax.random.uniform(k_pos, (n_points, 3), jnp.float32)

    out = net_forward(params, x, pos)
    out = jax.block_until_ready(out)

    assert out.shape == (n_points, num_classes), out.shape
    assert bool(jnp.all((out >= 0.0) & (out <= 1.0))), "sigmoid range violated"
    print("KERNEL_OK")
</pallas_src>

<mosaic_0001>
module attributes {stable_mosaic.version = 11 : i64} {
  func.func @_fps_kernel(%arg0: memref<8x128xf32, #tpu.memory_space<vmem>>, %arg1: memref<32x128xi32, #tpu.memory_space<vmem>>, %arg2: memref<1x128xf32, #tpu.memory_space<vmem>>) attributes {dimension_semantics = [], scalar_prefetch = 0 : i64, scratch_operands = 1 : i64, tpu.core_type = #tpu.core_type<tc>} {
    %0 = tpu.iota {dimensions = array<i32: 1>} : vector<1x128xi32>
    %c64_i32 = arith.constant 64 : i32
    %1 = vector.broadcast %c64_i32 : i32 to vector<1x128xi32>
    %2 = arith.cmpi slt, %0, %1 : vector<1x128xi32>
    %cst = arith.constant 3.000000e+38 : f32
    %cst_0 = arith.constant -3.000000e+38 : f32
    %3 = vector.broadcast %cst : f32 to vector<1x128xf32>
    %4 = vector.broadcast %cst_0 : f32 to vector<1x128xf32>
    %5 = arith.select %2, %3, %4 : vector<1x128xi1>, vector<1x128xf32>
    %c0 = arith.constant 0 : index
    %c0_1 = arith.constant 0 : index
    %6 = vector.load %arg2[%c0, %c0_1] : memref<1x128xf32, #tpu.memory_space<vmem>>, vector<1x128xf32>
    tpu.vector_store %arg2[%c0, %c0_1], %5 {strides = array<i32>} : memref<1x128xf32, #tpu.memory_space<vmem>>, vector<1x128xf32>,
    %c0_i32 = arith.constant 0 : i32
    %7 = vector.broadcast %c0_i32 : i32 to vector<1x128xi32>
    %c0_2 = arith.constant 0 : index
    %c0_3 = arith.constant 0 : index
    %8 = vector.load %arg1[%c0_2, %c0_3] : memref<32x128xi32, #tpu.memory_space<vmem>>, vector<1x128xi32>
    tpu.vector_store %arg1[%c0_2, %c0_3], %7 {strides = array<i32>} : memref<32x128xi32, #tpu.memory_space<vmem>>, vector<1x128xi32>,
    %c0_4 = arith.constant 0 : index
    %c0_5 = arith.constant 0 : index
    %9 = vector.load %arg0[%c0_4, %c0_5] : memref<8x128xf32, #tpu.memory_space<vmem>>, vector<8x128xf32>
    %10 = arith.mulf %9, %9 : vector<8x128xf32>
    %cst_6 = arith.constant dense<0.000000e+00> : vector<128xf32>
    %11 = vector.multi_reduction <add>, %10, %cst_6 [0] : vector<8x128xf32> to vector<128xf32>
    %12 = vector.shape_cast %11 : vector<128xf32> to vector<1x128xf32>
    %c0_i32_7 = arith.constant 0 : i32
    %13 = vector.broadcast %c0_i32_7 : i32 to vector<1x128xi32>
    %14 = arith.cmpi eq, %0, %13 : vector<1x128xi32>
    %15 = arith.extui %14 : vector<1x128xi1> to vector<1x128xi32>
    %16 = arith.sitofp %15 : vector<1x128xi32> to vector<1x128xf32>
    %17 = vector.broadcast %16 : vector<1x128xf32> to vector<8x128xf32>
    %18 = arith.mulf %9, %17 : vector<8x128xf32>
    %cst_8 = arith.constant dense<0.000000e+00> : vector<8xf32>
    %19 = vector.multi_reduction <add>, %18, %cst_8 [1] : vector<8x128xf32> to vector<8xf32>
    %20 = vector.shape_cast %19 : vector<8xf32> to vector<8x1xf32>
    %c1_i32 = arith.constant 1 : i32
    %c31_i32 = arith.constant 31 : i32
    %21 = arith.addi %c1_i32, %c31_i32 : i32
    %c1_i32_9 = arith.constant 1 : i32
    %22 = scf.for %arg3 = %c1_i32 to %21 step %c1_i32_9 iter_args(%arg4 = %20) -> (vector<8x1xf32>)  : i32 {
      %23 = arith.mulf %arg4, %arg4 : vector<8x1xf32>
      %24 = vector.shape_cast %23 : vector<8x1xf32> to vector<1x8x1xf32>
      %cst_11 = arith.constant dense<0.000000e+00> : vector<1xf32>
      %25 = vector.multi_reduction <add>, %24, %cst_11 [1, 2] : vector<1x8x1xf32> to vector<1xf32>
      %26 = vector.shape_cast %25 : vector<1xf32> to vector<1x1x1xf32>
      %27 = vector.extract %26[0, 0, 0] : f32 from vector<1x1x1xf32>
      %28 = vector.broadcast %arg4 : vector<8x1xf32> to vector<8x128xf32>
      %29 = arith.mulf %9, %28 : vector<8x128xf32>
      %cst_12 = arith.constant dense<0.000000e+00> : vector<128xf32>
      %30 = vector.multi_reduction <add>, %29, %cst_12 [0] : vector<8x128xf32> to vector<128xf32>
      %31 = vector.shape_cast %30 : vector<128xf32> to vector<1x128xf32>
      %32 = vector.broadcast %27 : f32 to vector<1x128xf32>
      %33 = arith.addf %12, %32 : vector<1x128xf32>
      %cst_13 = arith.constant 2.000000e+00 : f32
      %34 = vector.broadcast %cst_13 : f32 to vector<1x128xf32>
      %35 = arith.mulf %34, %31 : vector<1x128xf32>
      %36 = arith.subf %33, %35 : vector<1x128xf32>
      %cst_14 = arith.constant 0.000000e+00 : f32
      %37 = vector.broadcast %cst_14 : f32 to vector<1x128xf32>
      %38 = arith.maximumf %36, %37 : vector<1x128xf32>
      %c0_15 = arith.constant 0 : index
      %c0_16 = arith.constant 0 : index
      %39 = vector.load %arg2[%c0_15, %c0_16] : memref<1x128xf32, #tpu.memory_space<vmem>>, vector<1x128xf32>
      %40 = arith.minimumf %39, %38 : vector<1x128xf32>
      %c0_17 = arith.constant 0 : index
      %c0_18 = arith.constant 0 : index
      %41 = vector.load %arg2[%c0_17, %c0_18] : memref<1x128xf32, #tpu.memory_space<vmem>>, vector<1x128xf32>
      tpu.vector_store %arg2[%c0_17, %c0_18], %40 {strides = array<i32>} : memref<1x128xf32, #tpu.memory_space<vmem>>, vector<1x128xf32>,
      %42 = vector.shape_cast %40 : vector<1x128xf32> to vector<1x1x128xf32>
      %cst_19 = arith.constant dense<0xFF800000> : vector<1xf32>
      %43 = vector.multi_reduction <maximumf>, %42, %cst_19 [1, 2] : vector<1x1x128xf32> to vector<1xf32>
      %44 = vector.shape_cast %43 : vector<1xf32> to vector<1x1x1xf32>
      %45 = vector.extract %44[0, 0, 0] : f32 from vector<1x1x1xf32>
      %46 = vector.broadcast %45 : f32 to vector<1x128xf32>
      %47 = arith.cmpf oeq, %40, %46 : vector<1x128xf32>
      %c128_i32 = arith.constant 128 : i32
      %48 = vector.broadcast %c128_i32 : i32 to vector<1x128xi32>
      %49 = arith.select %47, %0, %48 : vector<1x128xi1>, vector<1x128xi32>
      %50 = vector.shape_cast %49 : vector<1x128xi32> to vector<1x1x128xi32>
      %cst_20 = arith.constant dense<2147483647> : vector<1xi32>
      %51 = vector.multi_reduction <minsi>, %50, %cst_20 [1, 2] : vector<1x1x128xi32> to vector<1xi32>
      %52 = vector.shape_cast %51 : vector<1xi32> to vector<1x1x1xi32>
      %53 = vector.extract %52[0, 0, 0] : i32 from vector<1x1x1xi32>
      %54 = vector.broadcast %53 : i32 to vector<1x128xi32>
      %55 = arith.index_cast %arg3 : i32 to index
      %c0_21 = arith.constant 0 : index
      %56 = vector.load %arg1[%55, %c0_21] : memref<32x128xi32, #tpu.memory_space<vmem>>, vector<1x128xi32>
      tpu.vector_store %arg1[%55, %c0_21], %54 {strides = array<i32>} : memref<32x128xi32, #tpu.memory_space<vmem>>, vector<1x128xi32>,
      %57 = vector.broadcast %53 : i32 to vector<1x128xi32>
      %58 = arith.cmpi eq, %0, %57 : vector<1x128xi32>
      %59 = arith.extui %58 : vector<1x128xi1> to vector<1x128xi32>
      %60 = arith.sitofp %59 : vector<1x128xi32> to vector<1x128xf32>
      %61 = vector.broadcast %60 : vector<1x128xf32> to vector<8x128xf32>
      %62 = arith.mulf %9, %61 : vector<8x128xf32>
      %cst_22 = arith.constant dense<0.000000e+00> : vector<8xf32>
      %63 = vector.multi_reduction <add>, %62, %cst_22 [1] : vector<8x128xf32> to vector<8xf32>
      %64 = vector.shape_cast %63 : vector<8xf32> to vector<8x1xf32>
      scf.yield %64 : vector<8x1xf32>
    }
    %c31_i32_10 = arith.constant 31 : i32
    return
  }
}

</mosaic_0001>

<llo_original>
// kernel: tpu_custom_call.1
$region0: #{tpu_custom_call.1}
  #allocation0 [shape = 'u32[]', space=smem, size = 0x4, offset = 0x4, fixed_abs, tag = 'smem constant byte address 0x4 - core index']
  #allocation1 [shape = 'u32[144,128]{1,0:T(1,128)}', space=vmem, size = 0x12000, scoped, tag = 'internal scratch']
  #allocation2 [shape = 'f32[1,128]{1,0:T(1,128)}', space=vmem, size = 0x200, scoped, tag = 'scratch operand']
  %s0 = inlined_call_operand.hbm [shape: f32[8,128], index: 0, kind: input, shape index: {}]
  %s1 = inlined_call_operand.hbm [shape: s32[32,128], index: 1, kind: output, shape index: {}]
  %s2 = sld [smem:[#allocation0]]
  $region25: #{tpu_custom_call.1} parent=0
    _
  %s4 = ssub.s32 1, %s2
  %s5 = scalar_select 0, %s4, %s2
  $region1: #{tpu_custom_call.1} parent=0
    #allocation3 [shape = 'u8[4096]{0}', space=vmem, size = 0x1000, scoped, tag = 'input window, operand 0, single buffered']
    #allocation4 [shape = 's32[1]{0}', space=sflag, size = 0x4, scoped, tag = 'scoped memory for tpu_custom_call.1']
    #allocation5 [shape = 's32[1]{0}', space=sflag, size = 0x4, scoped, tag = 'scoped memory for tpu_custom_call.1']
    #allocation6 [shape = 'u8[16384]{0}', space=vmem, size = 0x4000, scoped, tag = 'output window, operand 0, single buffered']
    %6 = vsyncpa [#allocation4], 0
    %7 = vsyncpa [#allocation5], 0
    // Predicated region
    $region2: #{tpu_custom_call.1} parent=1 // pred_check
      _
    $region3: #{tpu_custom_call.1} parent=1 // pred_check_branch
      %9 = sbr.rel (0) target = $region5
    $region4: #{tpu_custom_call.1} parent=1 // pred_region
      %s11 = ssub.s32 128, 128
      %12 = vsyncadd [#allocation4], %s11
      %s14 = sshll.u32 [#allocation3], 4
      %s15 = int_to_ptr.vmem [resolvable:$true] %s14
      %17 = dma.hbm_to_vmem [thread:$0]  %s0, 128, %s15, [#allocation4]
    $region5: #{tpu_custom_call.1} parent=1 // pred_fallthru
      _
    // Predicated region
    $region6: #{tpu_custom_call.1} parent=1 // pred_check
      _
    $region7: #{tpu_custom_call.1} parent=1 // pred_check_branch
      %19 = sbr.rel (0) target = $region9
    $region8: #{tpu_custom_call.1} parent=1 // pred_region
      %20 = dma.done [#allocation4], 128
    $region9: #{tpu_custom_call.1} parent=1 // pred_fallthru
      _
    %v21 = vlaneseq
    %v22 = vand.u32 %v21, 127
    %vm23 = vcmp.lt.s32.totalorder %v22, 64
    %v24 = vsel %vm23, 3e+38, -3e+38
    %25 = vst [vmem:[#allocation2] sm:$0x1] %v24
    %26 = vst [vmem:[#allocation6] sm:$0x1] 0
    %v27 = vld [vmem:[#allocation3] sm:$0xff]
    %v28 = vmul.f32 %v27, %v27
    %v29 = vrot.slane %v28, 4
    %v30 = vadd.f32 %v28, %v29
    %v31 = vrot.slane %v30, 2
    %v32 = vadd.f32 %v30, %v31
    %v33 = vrot.slane %v32, 1
    %v34 = vadd.f32 %v32, %v33
    %vm35 = vcmp.eq.s32.totalorder %v22, 0
    %v36 = vsel %vm35, 1, 0
    %v37 = vcvt.s32.f32 %v36
    %v38 = vmul.f32 %v27, %v37
    %39 = vadd.xlane.f32.xlu0 %v38
    %v40 = vpop.xlane.xlu0 %39
    loop: start=1, step=1, limit=32
    $region10: #{tpu_custom_call.1} parent=1 // loop_pre_header
      _
    $region11: #{tpu_custom_call.1} parent=1 // loop_header
      %s42 = sphi 1, %s46
      %p43 = scmp.ge.s32.totalorder %s42, 32
      %v47 = vphi %v40, %v122
    $region12: #{tpu_custom_call.1} parent=1 // loop_header_branch
      %45 = sbr.rel (%p43) target = $region16
    $region13: #{tpu_custom_call.1} parent=1 // loop_body
      %v48 = vmul.f32 %v47, %v47
      %vm49 = vcmask 7168
      %v50 = vsel %vm49, %v48, 0.0
      %51 = vadd.xlane.f32.xlu0 %v50
      %v52 = vpop.xlane.xlu0 %51
      %v53 = vrot.slane %v52, 4
      %v54 = vadd.f32 %v52, %v53
      %v55 = vrot.slane %v54, 2
      %v56 = vadd.f32 %v54, %v55
      %v57 = vrot.slane %v56, 1
      %v58 = vadd.f32 %v56, %v57
      %s59 = vtos %v58
      %v60 = vmul.f32 %v27, %v47
      %v61 = vrot.slane %v60, 4
      %v62 = vadd.f32 %v60, %v61
      %v63 = vrot.slane %v62, 2
      %v64 = vadd.f32 %v62, %v63
      %v65 = vrot.slane %v64, 1
      %v66 = vadd.f32 %v64, %v65
      %v67 = vstv %s59
      %v68 = vadd.f32 %v34, %v67
      %v69 = vmul.f32 %v66, 2.0
      %v70 = vsub.f32 %v68, %v69
      %v71 = vmax.f32 %v70, 0.0
      %v72 = vld [vmem:[#allocation2] sm:$0x1]
      %v73 = vmin.f32 %v72, %v71
      %74 = vst [vmem:[#allocation2] sm:$0x1] %v73
      %vm75 = vcmask 1040384
      %v76 = vsel %vm75, %v73, -inf
      %77 = vmax.xlane.f32.xlu0 %v76
      %v78 = vpop.xlane.xlu0 %77
      %v79 = vrot.slane %v78, 4
      %v80 = vmax.f32 %v78, %v79
      %v81 = vrot.slane %v80, 2
      %v82 = vmax.f32 %v80, %v81
      %v83 = vrot.slane %v82, 1
      %v84 = vmax.f32 %v82, %v83
      %s85 = vtos %v84
      %v86 = vstv %s85
      %vm87 = vcmp.eq.f32.partialorder %v73, %v86
      %v88 = vsel %vm87, %v22, 128
      %v89 = vsel %vm75, %v88, 2147483647
      %v90 = vand.u32 %v89, 65535
      %v91 = vshra.s32 %v89, 16
      %v92 = vcvt.s32.f32 %v90
      %v93 = vcvt.s32.f32 %v91
      %94 = vmin.xlane.f32.xlu0 %v93
      %v95 = vpop.xlane.xlu0 %94
      %vm96 = vcmp.eq.f32.partialorder %v93, %v95
      %v97 = vsel %vm96, %v92, inf
      %98 = vmin.xlane.f32.xlu0 %v97
      %v99 = vpop.xlane.xlu0 %98
      %v100 = vcvt.f32.s32 %v99
      %v101 = vcvt.f32.s32 %v95
      %v102 = vshll.u32 %v101, 16
      %v103 = vadd.s32 %v102, %v100
      %v104 = vrot.slane %v103, 4
      %vm105 = vcmp.lt.s32.totalorder %v103, %v104
      %v106 = vsel %vm105, %v103, %v104
      %v107 = vrot.slane %v106, 2
      %vm108 = vcmp.lt.s32.totalorder %v106, %v107
      %v109 = vsel %vm108, %v106, %v107
      %v110 = vrot.slane %v109, 1
      %vm111 = vcmp.lt.s32.totalorder %v109, %v110
      %v112 = vsel %vm111, %v109, %v110
      %s113 = vtos %v112
      %v114 = vstv %s113
      %s115 = scalar_lea.vmem [#allocation6], %s42
      %116 = vst [vmem:[%s115] sm:$0x1] %v114
      %vm117 = vcmp.eq.s32.totalorder %v22, %v114
      %v118 = vsel %vm117, 1, 0
      %v119 = vcvt.s32.f32 %v118
      %v120 = vmul.f32 %v27, %v119
      %121 = vadd.xlane.f32.xlu0 %v120
      %v122 = vpop.xlane.xlu0 %121
    $region14: #{tpu_custom_call.1} parent=1 // loop_footer
      %s46 = sadd.s32 1, %s42
    $region15: #{tpu_custom_call.1} parent=1 // loop_footer_branch
      %41 = sbr.rel target = $region11
    $region16: #{tpu_custom_call.1} parent=1 // loop_exit
      _
    // Predicated region
    $region17: #{tpu_custom_call.1} parent=1 // pred_check
      _
    $region18: #{tpu_custom_call.1} parent=1 // pred_check_branch
      %124 = sbr.rel (0) target = $region20
    $region19: #{tpu_custom_call.1} parent=1 // pred_region
      %s126 = ssub.s32 512, 512
      %127 = vsyncadd [#allocation5], %s126
      %s128 = sshll.u32 [#allocation6], 4
      %s129 = int_to_ptr.vmem [resolvable:$true] %s128
      %134 = dma.vmem_to_hbm [thread:$0]  %s129, 512, %s1, [#allocation5], 128, 128, 8
    $region20: #{tpu_custom_call.1} parent=1 // pred_fallthru
      _
    // Predicated region
    $region21: #{tpu_custom_call.1} parent=1 // pred_check
      _
    $region22: #{tpu_custom_call.1} parent=1 // pred_check_branch
      %136 = sbr.rel (0) target = $region24
    $region23: #{tpu_custom_call.1} parent=1 // pred_region
      %137 = dma.done [#allocation5], 512
    $region24: #{tpu_custom_call.1} parent=1 // pred_fallthru
      _
    %138 = vsyncpa [#allocation4], 1
    %139 = vsyncpa [#allocation5], 1

</llo_original>
